<compile_context>
chip_gen: v7x
topology: tpu7x:2x2x1
jax: 0.10.0
libtpu: 0.0.40
codegen_flags: <defaults>
</compile_context>

<pallas_src>
import jax
import jax.numpy as jnp
import numpy as np
from jax.experimental import pallas as pl
from jax.experimental.pallas import tpu as pltpu


# dw slab column layout (per channel, tiled over the batch tile NB):
#   0:3   freq depthwise weights (BN2 scale folded in)
#   3     freq-path shift       = bf * s2 + t2
#   4:7   temporal depthwise weights (BN1 scale AND 1/F pooling scale folded in)
#   7     temporal-path shift   = bt * s1 + t1
#   8     pointwise conv bias
#   9:9+C pointwise 1x1 weight rows: dw[n*C + c, 9 + i] = wp[c, i]
def make_base_block_kernel(NB, C, F, T):
    R = NB * C
    FT = F * T
    F_pow2 = (F & (F - 1)) == 0 and F > 0

    def kernel(x_ref, dw_ref, o_ref):
        # Force f32 compute even if I/O ever becomes bf16 (mandatory on v5e).
        x = x_ref[...].astype(jnp.float32)   # (R, FT)   flattened (freq, time)
        dw = dw_ref[...]                     # (R, 9+C)  packed per-channel params

        # ---- f2: depthwise freq conv (3,1), pad (1,0), bias+BN folded -------
        # Flat index j = f*T + t, so a +-1 freq shift is a +-T lane shift.
        # Shifts go through the XLU (pltpu.roll) + one VPU select each; the
        # wrapped lanes (freq boundary padding) are masked to zero.
        lane = jax.lax.broadcasted_iota(jnp.int32, (R, FT), 1)
        x_fm1 = jnp.where(lane >= T,
                          pltpu.roll(x, T, axis=1), 0.0)            # x[.., f-1, ..]
        x_fp1 = jnp.where(lane < FT - T,
                          pltpu.roll(x, (FT - T) % FT, axis=1), 0.0)  # x[.., f+1, ..]
        aux = (dw[:, 0:1] * x_fm1 + dw[:, 1:2] * x + dw[:, 2:3] * x_fp1
               + dw[:, 3:4])                                        # (R, FT)

        # ---- f1: AdaptiveAvgPool2d((1, None)) == mean over freq -------------
        # Tree reduction (first folds are 128-lane aligned halves). The 1/F
        # scale is already folded into the temporal weights dw[:, 4:7].
        if F_pow2:
            s = aux
            w = FT
            while w > T:
                h = w // 2
                s = s[:, :h] + s[:, h:]
                w = h
            pooled = s                                              # (R, T) = F * mean
        else:
            s = aux[:, 0:T]
            for f in range(1, F):
                s = s + aux[:, f * T:(f + 1) * T]
            pooled = s

        # depthwise temporal conv (1,3), pad (0,1), bias+BN+1/F folded, then SiLU.
        # T is tiny (16 lanes); the two 1-lane shifts here are negligible, so we
        # keep the simple concat form rather than a sub-128-lane roll.
        zpad = jnp.zeros((R, 1), jnp.float32)
        p_tm1 = jnp.concatenate([zpad, pooled[:, :T - 1]], axis=1)  # pooled[t-1]
        p_tp1 = jnp.concatenate([pooled[:, 1:], zpad], axis=1)      # pooled[t+1]
        z = (dw[:, 4:5] * p_tm1 + dw[:, 5:6] * pooled + dw[:, 6:7] * p_tp1
             + dw[:, 7:8])
        # SiLU kept exact (reference-accurate); pl.reciprocal(approx=True) only
        # pays off for much larger T and would loosen the test tolerance.
        z = z * (1.0 / (1.0 + jnp.exp(-z)))                         # (R, T)

        # ---- pointwise 1x1 conv across channels ------------------------------
        # (C,C)@(C,T) per batch item is far too small for the MXU; do C
        # broadcast multiply-adds on the VPU in the (NB, C, T) view.  wp columns
        # are pre-tiled into dw so each column is extracted/broadcast exactly once.
        z3 = z.reshape(NB, C, T)
        wp3 = dw[:, 9:9 + C].reshape(NB, C, C)   # wp3[n, c, i] = wp[c, i]
        u3 = wp3[:, :, 0:1] * z3[:, 0:1, :]      # start from first MAC term
        for i in range(1, C):
            u3 = u3 + wp3[:, :, i:i + 1] * z3[:, i:i + 1, :]
        u = u3.reshape(R, T) + dw[:, 8:9]        # (R, T), + pointwise bias
        # Dropout is identity at inference time.
        # TODO(synk): training-mode Dropout / batch-stat BatchNorm not implemented.

        # ---- residual (pointwise output broadcast over freq) + ReLU ----------
        ub = u
        if F_pow2:
            while ub.shape[1] < FT:              # log-doubling: 4 concats, not 15
                ub = jnp.concatenate([ub, ub], axis=1)
        else:
            ub = jnp.concatenate([u] * F, axis=1)
        out = jnp.maximum(ub + aux + x, 0.0)
        o_ref[...] = out.astype(o_ref.dtype)     # lane-dense (FT multiple of 128) store

    return kernel


def fold_and_pack_params(p, NB, F):
    """Fold conv bias + BN running stats (and the 1/F pooling scale) into the
    depthwise weights and pack all per-channel params + the pointwise weight
    into one slab, tiled over the batch tile (done once, outside the kernel)."""
    C = p["wp"].shape[0]
    wf_f = p["wf"] * p["s2"]                         # (C,3)
    sh2 = p["bf"] * p["s2"] + p["t2"]                # (C,1)
    wt_f = p["wt"] * p["s1"] * (1.0 / F)             # (C,3) -- 1/F pooling folded in
    sh1 = p["bt"] * p["s1"] + p["t1"]                # (C,1)
    base = jnp.concatenate([wf_f, sh2, wt_f, sh1, p["bp"], p["wp"]], axis=1)  # (C, 9+C)
    return jnp.tile(base, (NB, 1)).astype(jnp.float32)                        # (NB*C, 9+C)


def base_block_pallas(x, p):
    N, C, F, T = x.shape
    FT = F * T
    # The +-T lane-shift == +-1 freq-shift identity only holds with stride 1,
    # dilation 1 and a contiguous time axis (guaranteed by the reshape below).
    assert F >= 2 and T >= 2

    # Batch tile NB: largest divisor of N keeping the double-buffered in+out
    # blocks within a ~4 MiB budget (safe for v7x's 64 MiB VMEM); for small
    # batches the whole problem runs in one grid step.
    budget = 4 * 1024 * 1024
    per_item = C * FT * 4 * 4          # x + out blocks, double-buffered, f32
    NB = 1
    for cand in range(N, 0, -1):
        if N % cand == 0 and cand * per_item <= budget:
            NB = cand
            break
    grid = (N // NB,)
    R = NB * C

    dw = fold_and_pack_params(p, NB, F)
    # Lane-dense layout baked into the HBM arrays: last dim F*T (multiple of 128
    # here), so elementwise work and stores use full vector lanes.
    x_flat = x.reshape(N * C, FT)

    kernel = make_base_block_kernel(NB, C, F, T)
    out_flat = pl.pallas_call(
        kernel,
        out_shape=jax.ShapeDtypeStruct((N * C, FT), x.dtype),
        grid_spec=pltpu.PrefetchScalarGridSpec(
            num_scalar_prefetch=0,
            grid=grid,
            in_specs=[
                pl.BlockSpec((R, FT), lambda i: (i, 0)),      # x (flattened, batch-tiled)
                pl.BlockSpec((R, 9 + C), lambda i: (0, 0)),   # packed params + wp
            ],
            out_specs=pl.BlockSpec((R, FT), lambda i: (i, 0)),
        ),
        # Leading batch axis is "parallel" so v7x's two TensorCores shard it
        # when N grows; at the test size it is a single step.
        compiler_params=pltpu.CompilerParams(
            dimension_semantics=("parallel",)),
    )(x_flat, dw)
    return out_flat.reshape(N, C, F, T)


def ref_forward(x, p):
    """Pure-JAX reference of BaseBlock.forward (in==out channels, inference)."""
    N, C, F, T = x.shape
    wf = p["wf"].reshape(C, 1, 3, 1)
    aux = jax.lax.conv_general_dilated(
        x, wf, window_strides=(1, 1), padding=((1, 1), (0, 0)),
        dimension_numbers=("NCHW", "OIHW", "NCHW"), feature_group_count=C)
    aux = aux + p["bf"].reshape(1, C, 1, 1)
    aux = aux * p["s2"].reshape(1, C, 1, 1) + p["t2"].reshape(1, C, 1, 1)

    pooled = jnp.mean(aux, axis=2, keepdims=True)        # AdaptiveAvgPool2d((1, None))
    wt = p["wt"].reshape(C, 1, 1, 3)
    z = jax.lax.conv_general_dilated(
        pooled, wt, window_strides=(1, 1), padding=((0, 0), (1, 1)),
        dimension_numbers=("NCHW", "OIHW", "NCHW"), feature_group_count=C)
    z = z + p["bt"].reshape(1, C, 1, 1)
    z = z * p["s1"].reshape(1, C, 1, 1) + p["t1"].reshape(1, C, 1, 1)
    z = z * jax.nn.sigmoid(z)
    u = jax.lax.conv_general_dilated(
        z, p["wp"].reshape(C, C, 1, 1), window_strides=(1, 1),
        padding=((0, 0), (0, 0)),
        dimension_numbers=("NCHW", "OIHW", "NCHW"))
    u = u + p["bp"].reshape(1, C, 1, 1)
    out = u + aux + x
    return jnp.maximum(out, 0.0)


def make_params(key, C, eps=1e-5):
    ks = jax.random.split(key, 12)

    def bn_fold(kg, kb, km, kv):
        gamma = 1.0 + 0.1 * jax.random.normal(kg, (C,), jnp.float32)
        beta = 0.1 * jax.random.normal(kb, (C,), jnp.float32)
        rmean = 0.1 * jax.random.normal(km, (C,), jnp.float32)
        rvar = jnp.abs(1.0 + 0.1 * jax.random.normal(kv, (C,), jnp.float32))
        scale = gamma / jnp.sqrt(rvar + eps)
        shift = beta - rmean * scale
        return scale, shift

    s2, t2 = bn_fold(ks[0], ks[1], ks[2], ks[3])   # BN after freq conv
    s1, t1 = bn_fold(ks[4], ks[5], ks[6], ks[7])   # BN after temporal conv
    p = {
        "wf": 0.3 * jax.random.normal(ks[8], (C, 3), jnp.float32),
        "bf": (0.05 * jax.random.normal(ks[9], (C,), jnp.float32)).reshape(C, 1),
        "s2": s2.reshape(C, 1), "t2": t2.reshape(C, 1),
        "wt": 0.3 * jax.random.normal(ks[10], (C, 3), jnp.float32),
        "bt": (0.05 * jax.random.normal(ks[11], (C,), jnp.float32)).reshape(C, 1),
        "s1": s1.reshape(C, 1), "t1": t1.reshape(C, 1),
        "wp": 0.2 * jax.random.normal(jax.random.fold_in(key, 100), (C, C), jnp.float32),
        "bp": (0.05 * jax.random.normal(jax.random.fold_in(key, 101), (C,), jnp.float32)).reshape(C, 1),
    }
    return p


if __name__ == "__main__":
    N, C, F, T = 2, 8, 16, 16
    key = jax.random.PRNGKey(0)
    kx, kp = jax.random.split(key)
    x = jax.random.normal(kx, (N, C, F, T), jnp.float32)
    params = make_params(kp, C)

    out = jax.block_until_ready(base_block_pallas(x, params))
    ref = jax.block_until_ready(ref_forward(x, params))
    np.testing.assert_allclose(np.asarray(out), np.asarray(ref), atol=1e-4, rtol=1e-4)

    print("KERNEL_OK")
</pallas_src>

<mosaic_0001>
module attributes {stable_mosaic.version = 11 : i64} {
  func.func @kernel(%arg0: i32, %arg1: memref<16x256xf32, #tpu.memory_space<vmem>>, %arg2: memref<16x17xf32, #tpu.memory_space<vmem>>, %arg3: memref<16x256xf32, #tpu.memory_space<vmem>>) attributes {dimension_semantics = [#tpu.dimension_semantics<parallel>], iteration_bounds = array<i64: 1>, scalar_prefetch = 0 : i64, scratch_operands = 0 : i64, tpu.core_type = #tpu.core_type<tc>, window_params = [{transform_indices = @transform_0, window_bounds = array<i64: 16, 256>}, {pipeline_mode = #tpu.pipeline_mode<synchronous>, transform_indices = @transform_1, window_bounds = array<i64: 16, 17>}, {transform_indices = @transform_2, window_bounds = array<i64: 16, 256>}]} {
    %c0 = arith.constant 0 : index
    %c0_0 = arith.constant 0 : index
    %0 = vector.load %arg1[%c0, %c0_0] : memref<16x256xf32, #tpu.memory_space<vmem>>, vector<16x256xf32>
    %c0_1 = arith.constant 0 : index
    %c0_2 = arith.constant 0 : index
    %1 = vector.load %arg2[%c0_1, %c0_2] : memref<16x17xf32, #tpu.memory_space<vmem>>, vector<16x17xf32>
    %2 = tpu.iota {dimensions = array<i32: 1>} : vector<16x256xi32>
    %c16_i32 = arith.constant 16 : i32
    %3 = vector.broadcast %c16_i32 : i32 to vector<16x256xi32>
    %4 = arith.cmpi sge, %2, %3 : vector<16x256xi32>
    %c16_i32_3 = arith.constant 16 : i32
    %5 = tpu.dynamic_rotate %0 by %c16_i32_3 dim 1 : vector<16x256xf32>, i32 -> vector<16x256xf32>
    %cst = arith.constant 0.000000e+00 : f32
    %6 = vector.broadcast %cst : f32 to vector<16x256xf32>
    %7 = arith.select %4, %5, %6 : vector<16x256xi1>, vector<16x256xf32>
    %c240_i32 = arith.constant 240 : i32
    %8 = vector.broadcast %c240_i32 : i32 to vector<16x256xi32>
    %9 = arith.cmpi slt, %2, %8 : vector<16x256xi32>
    %c240_i32_4 = arith.constant 240 : i32
    %10 = tpu.dynamic_rotate %0 by %c240_i32_4 dim 1 : vector<16x256xf32>, i32 -> vector<16x256xf32>
    %cst_5 = arith.constant 0.000000e+00 : f32
    %11 = vector.broadcast %cst_5 : f32 to vector<16x256xf32>
    %12 = arith.select %9, %10, %11 : vector<16x256xi1>, vector<16x256xf32>
    %13 = vector.extract_strided_slice %1 {offsets = [0, 0], sizes = [16, 1], strides = [1, 1]} : vector<16x17xf32> to vector<16x1xf32>
    %14 = vector.broadcast %13 : vector<16x1xf32> to vector<16x256xf32>
    %15 = arith.mulf %14, %7 : vector<16x256xf32>
    %16 = vector.extract_strided_slice %1 {offsets = [0, 1], sizes = [16, 1], strides = [1, 1]} : vector<16x17xf32> to vector<16x1xf32>
    %17 = vector.broadcast %16 : vector<16x1xf32> to vector<16x256xf32>
    %18 = arith.mulf %17, %0 : vector<16x256xf32>
    %19 = arith.addf %15, %18 : vector<16x256xf32>
    %20 = vector.extract_strided_slice %1 {offsets = [0, 2], sizes = [16, 1], strides = [1, 1]} : vector<16x17xf32> to vector<16x1xf32>
    %21 = vector.broadcast %20 : vector<16x1xf32> to vector<16x256xf32>
    %22 = arith.mulf %21, %12 : vector<16x256xf32>
    %23 = arith.addf %19, %22 : vector<16x256xf32>
    %24 = vector.extract_strided_slice %1 {offsets = [0, 3], sizes = [16, 1], strides = [1, 1]} : vector<16x17xf32> to vector<16x1xf32>
    %25 = vector.broadcast %24 : vector<16x1xf32> to vector<16x256xf32>
    %26 = arith.addf %23, %25 : vector<16x256xf32>
    %27 = vector.extract_strided_slice %26 {offsets = [0, 0], sizes = [16, 128], strides = [1, 1]} : vector<16x256xf32> to vector<16x128xf32>
    %28 = vector.extract_strided_slice %26 {offsets = [0, 128], sizes = [16, 128], strides = [1, 1]} : vector<16x256xf32> to vector<16x128xf32>
    %29 = arith.addf %27, %28 : vector<16x128xf32>
    %30 = vector.extract_strided_slice %29 {offsets = [0, 0], sizes = [16, 64], strides = [1, 1]} : vector<16x128xf32> to vector<16x64xf32>
    %31 = vector.extract_strided_slice %29 {offsets = [0, 64], sizes = [16, 64], strides = [1, 1]} : vector<16x128xf32> to vector<16x64xf32>
    %32 = arith.addf %30, %31 : vector<16x64xf32>
    %33 = vector.extract_strided_slice %32 {offsets = [0, 0], sizes = [16, 32], strides = [1, 1]} : vector<16x64xf32> to vector<16x32xf32>
    %34 = vector.extract_strided_slice %32 {offsets = [0, 32], sizes = [16, 32], strides = [1, 1]} : vector<16x64xf32> to vector<16x32xf32>
    %35 = arith.addf %33, %34 : vector<16x32xf32>
    %36 = vector.extract_strided_slice %35 {offsets = [0, 0], sizes = [16, 16], strides = [1, 1]} : vector<16x32xf32> to vector<16x16xf32>
    %37 = vector.extract_strided_slice %35 {offsets = [0, 16], sizes = [16, 16], strides = [1, 1]} : vector<16x32xf32> to vector<16x16xf32>
    %38 = arith.addf %36, %37 : vector<16x16xf32>
    %cst_6 = arith.constant 0.000000e+00 : f32
    %39 = vector.broadcast %cst_6 : f32 to vector<16x1xf32>
    %40 = vector.extract_strided_slice %38 {offsets = [0, 0], sizes = [16, 15], strides = [1, 1]} : vector<16x16xf32> to vector<16x15xf32>
    %41 = tpu.concatenate %39, %40 in 1 : vector<16x1xf32>, vector<16x15xf32> -> vector<16x16xf32>
    %42 = vector.extract_strided_slice %38 {offsets = [0, 1], sizes = [16, 15], strides = [1, 1]} : vector<16x16xf32> to vector<16x15xf32>
    %43 = tpu.concatenate %42, %39 in 1 : vector<16x15xf32>, vector<16x1xf32> -> vector<16x16xf32>
    %44 = vector.extract_strided_slice %1 {offsets = [0, 4], sizes = [16, 1], strides = [1, 1]} : vector<16x17xf32> to vector<16x1xf32>
    %45 = vector.broadcast %44 : vector<16x1xf32> to vector<16x16xf32>
    %46 = arith.mulf %45, %41 : vector<16x16xf32>
    %47 = vector.extract_strided_slice %1 {offsets = [0, 5], sizes = [16, 1], strides = [1, 1]} : vector<16x17xf32> to vector<16x1xf32>
    %48 = vector.broadcast %47 : vector<16x1xf32> to vector<16x16xf32>
    %49 = arith.mulf %48, %38 : vector<16x16xf32>
    %50 = arith.addf %46, %49 : vector<16x16xf32>
    %51 = vector.extract_strided_slice %1 {offsets = [0, 6], sizes = [16, 1], strides = [1, 1]} : vector<16x17xf32> to vector<16x1xf32>
    %52 = vector.broadcast %51 : vector<16x1xf32> to vector<16x16xf32>
    %53 = arith.mulf %52, %43 : vector<16x16xf32>
    %54 = arith.addf %50, %53 : vector<16x16xf32>
    %55 = vector.extract_strided_slice %1 {offsets = [0, 7], sizes = [16, 1], strides = [1, 1]} : vector<16x17xf32> to vector<16x1xf32>
    %56 = vector.broadcast %55 : vector<16x1xf32> to vector<16x16xf32>
    %57 = arith.addf %54, %56 : vector<16x16xf32>
    %cst_7 = arith.constant 0.000000e+00 : f32
    %58 = vector.broadcast %cst_7 : f32 to vector<16x16xf32>
    %59 = arith.subf %58, %57 : vector<16x16xf32>
    %60 = math.exp %59 : vector<16x16xf32>
    %cst_8 = arith.constant 1.000000e+00 : f32
    %61 = vector.broadcast %cst_8 : f32 to vector<16x16xf32>
    %62 = arith.addf %61, %60 : vector<16x16xf32>
    %cst_9 = arith.constant 1.000000e+00 : f32
    %63 = vector.broadcast %cst_9 : f32 to vector<16x16xf32>
    %64 = arith.divf %63, %62 : vector<16x16xf32>
    %65 = arith.mulf %57, %64 : vector<16x16xf32>
    %66 = vector.shape_cast %65 : vector<16x16xf32> to vector<2x8x16xf32>
    %67 = vector.extract_strided_slice %1 {offsets = [0, 9], sizes = [16, 8], strides = [1, 1]} : vector<16x17xf32> to vector<16x8xf32>
    %68 = vector.shape_cast %67 : vector<16x8xf32> to vector<2x8x8xf32>
    %69 = vector.extract_strided_slice %68 {offsets = [0, 0, 0], sizes = [2, 8, 1], strides = [1, 1, 1]} : vector<2x8x8xf32> to vector<2x8x1xf32>
    %70 = vector.extract_strided_slice %66 {offsets = [0, 0, 0], sizes = [2, 1, 16], strides = [1, 1, 1]} : vector<2x8x16xf32> to vector<2x1x16xf32>
    %71 = vector.broadcast %69 : vector<2x8x1xf32> to vector<2x8x16xf32>
    %72 = vector.broadcast %70 : vector<2x1x16xf32> to vector<2x8x16xf32>
    %73 = arith.mulf %71, %72 : vector<2x8x16xf32>
    %74 = vector.extract_strided_slice %68 {offsets = [0, 0, 1], sizes = [2, 8, 1], strides = [1, 1, 1]} : vector<2x8x8xf32> to vector<2x8x1xf32>
    %75 = vector.extract_strided_slice %66 {offsets = [0, 1, 0], sizes = [2, 1, 16], strides = [1, 1, 1]} : vector<2x8x16xf32> to vector<2x1x16xf32>
    %76 = vector.broadcast %74 : vector<2x8x1xf32> to vector<2x8x16xf32>
    %77 = vector.broadcast %75 : vector<2x1x16xf32> to vector<2x8x16xf32>
    %78 = arith.mulf %76, %77 : vector<2x8x16xf32>
    %79 = arith.addf %73, %78 : vector<2x8x16xf32>
    %80 = vector.extract_strided_slice %68 {offsets = [0, 0, 2], sizes = [2, 8, 1], strides = [1, 1, 1]} : vector<2x8x8xf32> to vector<2x8x1xf32>
    %81 = vector.extract_strided_slice %66 {offsets = [0, 2, 0], sizes = [2, 1, 16], strides = [1, 1, 1]} : vector<2x8x16xf32> to vector<2x1x16xf32>
    %82 = vector.broadcast %80 : vector<2x8x1xf32> to vector<2x8x16xf32>
    %83 = vector.broadcast %81 : vector<2x1x16xf32> to vector<2x8x16xf32>
    %84 = arith.mulf %82, %83 : vector<2x8x16xf32>
    %85 = arith.addf %79, %84 : vector<2x8x16xf32>
    %86 = vector.extract_strided_slice %68 {offsets = [0, 0, 3], sizes = [2, 8, 1], strides = [1, 1, 1]} : vector<2x8x8xf32> to vector<2x8x1xf32>
    %87 = vector.extract_strided_slice %66 {offsets = [0, 3, 0], sizes = [2, 1, 16], strides = [1, 1, 1]} : vector<2x8x16xf32> to vector<2x1x16xf32>
    %88 = vector.broadcast %86 : vector<2x8x1xf32> to vector<2x8x16xf32>
    %89 = vector.broadcast %87 : vector<2x1x16xf32> to vector<2x8x16xf32>
    %90 = arith.mulf %88, %89 : vector<2x8x16xf32>
    %91 = arith.addf %85, %90 : vector<2x8x16xf32>
    %92 = vector.extract_strided_slice %68 {offsets = [0, 0, 4], sizes = [2, 8, 1], strides = [1, 1, 1]} : vector<2x8x8xf32> to vector<2x8x1xf32>
    %93 = vector.extract_strided_slice %66 {offsets = [0, 4, 0], sizes = [2, 1, 16], strides = [1, 1, 1]} : vector<2x8x16xf32> to vector<2x1x16xf32>
    %94 = vector.broadcast %92 : vector<2x8x1xf32> to vector<2x8x16xf32>
    %95 = vector.broadcast %93 : vector<2x1x16xf32> to vector<2x8x16xf32>
    %96 = arith.mulf %94, %95 : vector<2x8x16xf32>
    %97 = arith.addf %91, %96 : vector<2x8x16xf32>
    %98 = vector.extract_strided_slice %68 {offsets = [0, 0, 5], sizes = [2, 8, 1], strides = [1, 1, 1]} : vector<2x8x8xf32> to vector<2x8x1xf32>
    %99 = vector.extract_strided_slice %66 {offsets = [0, 5, 0], sizes = [2, 1, 16], strides = [1, 1, 1]} : vector<2x8x16xf32> to vector<2x1x16xf32>
    %100 = vector.broadcast %98 : vector<2x8x1xf32> to vector<2x8x16xf32>
    %101 = vector.broadcast %99 : vector<2x1x16xf32> to vector<2x8x16xf32>
    %102 = arith.mulf %100, %101 : vector<2x8x16xf32>
    %103 = arith.addf %97, %102 : vector<2x8x16xf32>
    %104 = vector.extract_strided_slice %68 {offsets = [0, 0, 6], sizes = [2, 8, 1], strides = [1, 1, 1]} : vector<2x8x8xf32> to vector<2x8x1xf32>
    %105 = vector.extract_strided_slice %66 {offsets = [0, 6, 0], sizes = [2, 1, 16], strides = [1, 1, 1]} : vector<2x8x16xf32> to vector<2x1x16xf32>
    %106 = vector.broadcast %104 : vector<2x8x1xf32> to vector<2x8x16xf32>
    %107 = vector.broadcast %105 : vector<2x1x16xf32> to vector<2x8x16xf32>
    %108 = arith.mulf %106, %107 : vector<2x8x16xf32>
    %109 = arith.addf %103, %108 : vector<2x8x16xf32>
    %110 = vector.extract_strided_slice %68 {offsets = [0, 0, 7], sizes = [2, 8, 1], strides = [1, 1, 1]} : vector<2x8x8xf32> to vector<2x8x1xf32>
    %111 = vector.extract_strided_slice %66 {offsets = [0, 7, 0], sizes = [2, 1, 16], strides = [1, 1, 1]} : vector<2x8x16xf32> to vector<2x1x16xf32>
    %112 = vector.broadcast %110 : vector<2x8x1xf32> to vector<2x8x16xf32>
    %113 = vector.broadcast %111 : vector<2x1x16xf32> to vector<2x8x16xf32>
    %114 = arith.mulf %112, %113 : vector<2x8x16xf32>
    %115 = arith.addf %109, %114 : vector<2x8x16xf32>
    %116 = vector.shape_cast %115 : vector<2x8x16xf32> to vector<16x16xf32>
    %117 = vector.extract_strided_slice %1 {offsets = [0, 8], sizes = [16, 1], strides = [1, 1]} : vector<16x17xf32> to vector<16x1xf32>
    %118 = vector.broadcast %117 : vector<16x1xf32> to vector<16x16xf32>
    %119 = arith.addf %116, %118 : vector<16x16xf32>
    %120 = tpu.concatenate %119, %119 in 1 : vector<16x16xf32>, vector<16x16xf32> -> vector<16x32xf32>
    %121 = tpu.concatenate %120, %120 in 1 : vector<16x32xf32>, vector<16x32xf32> -> vector<16x64xf32>
    %122 = tpu.concatenate %121, %121 in 1 : vector<16x64xf32>, vector<16x64xf32> -> vector<16x128xf32>
    %123 = tpu.concatenate %122, %122 in 1 : vector<16x128xf32>, vector<16x128xf32> -> vector<16x256xf32>
    %124 = arith.addf %123, %26 : vector<16x256xf32>
    %125 = arith.addf %124, %0 : vector<16x256xf32>
    %cst_10 = arith.constant 0.000000e+00 : f32
    %126 = vector.broadcast %cst_10 : f32 to vector<16x256xf32>
    %127 = arith.maximumf %125, %126 : vector<16x256xf32>
    %c0_11 = arith.constant 0 : index
    %c0_12 = arith.constant 0 : index
    %128 = vector.load %arg3[%c0_11, %c0_12] : memref<16x256xf32, #tpu.memory_space<vmem>>, vector<16x256xf32>
    tpu.vector_store %arg3[%c0_11, %c0_12], %127 {strides = array<i32>} : memref<16x256xf32, #tpu.memory_space<vmem>>, vector<16x256xf32>,
    return
  }
  func.func @transform_0(%arg0: i32) -> (i32, i32) {
    %c0_i32 = arith.constant 0 : i32
    %c0_i32_0 = arith.constant 0 : i32
    return %arg0, %c0_i32 : i32, i32
  }
  func.func @transform_1(%arg0: i32) -> (i32, i32) {
    %c0_i32 = arith.constant 0 : i32
    %c0_i32_0 = arith.constant 0 : i32
    %c0_i32_1 = arith.constant 0 : i32
    return %c0_i32, %c0_i32_0 : i32, i32
  }
  func.func @transform_2(%arg0: i32) -> (i32, i32) {
    %c0_i32 = arith.constant 0 : i32
    %c0_i32_0 = arith.constant 0 : i32
    return %arg0, %c0_i32 : i32, i32
  }
}

</mosaic_0001>

<llo_original>
// kernel: tpu_custom_call.1
$region0: #{tpu_custom_call.1}
  #allocation0 [shape = 'u32[]', space=smem, size = 0x4, offset = 0x4, fixed_abs, tag = 'smem constant byte address 0x4 - core index']
  #allocation1 [shape = 'u32[144,128]{1,0:T(1,128)}', space=vmem, size = 0x12000, scoped, tag = 'internal scratch']
  %s0 = inlined_call_operand.hbm [shape: f32[16,256], index: 0, kind: input, shape index: {}]
  %s1 = inlined_call_operand.hbm [shape: f32[16,17], index: 1, kind: input, shape index: {}]
  %s2 = inlined_call_operand.hbm [shape: f32[16,256], index: 2, kind: output, shape index: {}]
  %s3 = sld [smem:[#allocation0]]
  $region26: #{tpu_custom_call.1} parent=0
    _
  %s5 = ssub.s32 1, %s3
  %s6 = scalar_select 0, %s5, %s3
  $region1: #{tpu_custom_call.1} parent=0
    #allocation2 [shape = 'u8[16384]{0}', space=vmem, size = 0x4000, scoped, tag = 'input window, operand 0, single buffered']
    #allocation3 [shape = 's32[1]{0}', space=sflag, size = 0x4, scoped, tag = 'scoped memory for tpu_custom_call.1']
    #allocation4 [shape = 's32[1]{0}', space=sflag, size = 0x4, scoped, tag = 'scoped memory for tpu_custom_call.1']
    #allocation5 [shape = 'u8[8192]{0}', space=vmem, size = 0x2000, scoped, tag = 'input window, operand 1, single buffered']
    #allocation6 [shape = 's32[1]{0}', space=sflag, size = 0x4, scoped, tag = 'scoped memory for tpu_custom_call.1']
    #allocation7 [shape = 'u8[16384]{0}', space=vmem, size = 0x4000, scoped, tag = 'output window, operand 0, single buffered']
    %7 = vsyncpa [#allocation3], 0
    %8 = vsyncpa [#allocation6], 0
    %9 = vsyncpa [#allocation4], 0
    // Predicated region
    $region2: #{tpu_custom_call.1} parent=1 // pred_check
      _
    $region3: #{tpu_custom_call.1} parent=1 // pred_check_branch
      %11 = sbr.rel (0) target = $region5
    $region4: #{tpu_custom_call.1} parent=1 // pred_region
      %s13 = ssub.s32 512, 512
      %14 = vsyncadd [#allocation3], %s13
      %s15 = sshll.u32 [#allocation2], 4
      %s16 = int_to_ptr.vmem [resolvable:$true] %s15
      %21 = dma.hbm_to_vmem [thread:$0]  %s0, 512, %s16, [#allocation3], 256, 256, 16
    $region5: #{tpu_custom_call.1} parent=1 // pred_fallthru
      _
    // Predicated region
    $region6: #{tpu_custom_call.1} parent=1 // pred_check
      _
    $region7: #{tpu_custom_call.1} parent=1 // pred_check_branch
      %23 = sbr.rel (0) target = $region9
    $region8: #{tpu_custom_call.1} parent=1 // pred_region
      %s25 = ssub.s32 256, 256
      %26 = vsyncadd [#allocation6], %s25
      %s27 = sshll.u32 [#allocation5], 4
      %s28 = int_to_ptr.vmem [resolvable:$true] %s27
      %33 = dma.hbm_to_vmem [thread:$0]  %s1, 256, %s28, [#allocation6], 128, 128, 8
    $region9: #{tpu_custom_call.1} parent=1 // pred_fallthru
      _
    // Predicated region
    $region10: #{tpu_custom_call.1} parent=1 // pred_check
      _
    $region11: #{tpu_custom_call.1} parent=1 // pred_check_branch
      %35 = sbr.rel (0) target = $region13
    $region12: #{tpu_custom_call.1} parent=1 // pred_region
      %36 = dma.done [#allocation3], 512
    $region13: #{tpu_custom_call.1} parent=1 // pred_fallthru
      _
    // Predicated region
    $region14: #{tpu_custom_call.1} parent=1 // pred_check
      _
    $region15: #{tpu_custom_call.1} parent=1 // pred_check_branch
      %38 = sbr.rel (0) target = $region17
    $region16: #{tpu_custom_call.1} parent=1 // pred_region
      %39 = dma.done [#allocation6], 256
    $region17: #{tpu_custom_call.1} parent=1 // pred_fallthru
      _
    %v40 = vld [vmem:[#allocation2] sm:$0xff]
    %v41 = vld [vmem:[#allocation2 + $0x8] sm:$0xff]
    %v42 = vld [vmem:[#allocation2 + $0x10] sm:$0xff]
    %v43 = vld [vmem:[#allocation2 + $0x18] sm:$0xff]
    %v44 = vld [vmem:[#allocation5] sm:$0xff]
    %v45 = vld [vmem:[#allocation5 + $0x8] sm:$0xff]
    %v46 = vlaneseq
    %v47 = vand.u32 %v46, 127
    %v48 = vadd.s32 %v47, 128
    %vm49 = vcmp.ge.s32.totalorder %v47, 16
    %vm50 = vcmp.ge.s32.totalorder %v48, 16
    %51 = vrot.lane.b32.xlu0 %v40, 16
    %v52 = vpop.permute.xlu0 %51
    %53 = vrot.lane.b32.xlu0 %v42, 16
    %v54 = vpop.permute.xlu0 %53
    %55 = vrot.lane.b32.xlu0 %v41, 16
    %v56 = vpop.permute.xlu0 %55
    %57 = vrot.lane.b32.xlu0 %v43, 16
    %v58 = vpop.permute.xlu0 %57
    %vm59 = vcmp.lt.s32.totalorder %v47, 16
    %v60 = vsel %vm59, %v52, %v56
    %v61 = vsel %vm59, %v54, %v58
    %v62 = vsel %vm59, %v56, %v52
    %v63 = vsel %vm59, %v58, %v54
    %v64 = vsel %vm49, %v62, 0.0
    %v65 = vsel %vm50, %v60, 0.0
    %v66 = vsel %vm49, %v63, 0.0
    %v67 = vsel %vm50, %v61, 0.0
    %vm68 = vcmp.lt.s32.totalorder %v47, 240
    %vm69 = vcmp.lt.s32.totalorder %v48, 240
    %70 = vrot.lane.b32.xlu0 %v40, 112
    %v71 = vpop.permute.xlu0 %70
    %72 = vrot.lane.b32.xlu0 %v42, 112
    %v73 = vpop.permute.xlu0 %72
    %74 = vrot.lane.b32.xlu0 %v41, 112
    %v75 = vpop.permute.xlu0 %74
    %76 = vrot.lane.b32.xlu0 %v43, 112
    %v77 = vpop.permute.xlu0 %76
    %vm78 = vcmp.lt.s32.totalorder %v47, 112
    %v79 = vsel %vm78, %v71, %v75
    %v80 = vsel %vm78, %v73, %v77
    %v81 = vsel %vm78, %v75, %v71
    %v82 = vsel %vm78, %v77, %v73
    %v83 = vsel %vm68, %v79, 0.0
    %v84 = vsel %vm69, %v81, 0.0
    %v85 = vsel %vm68, %v80, 0.0
    %v86 = vsel %vm69, %v82, 0.0
    %88 = vset.pattern.permute.xlu0 0
    %89 = vperm.xlu0 %88, %v44
    %v90 = vpop.permute.xlu0 %89
    %93 = vset.pattern.permute.xlu0 0
    %94 = vperm.xlu0 %93, %v45
    %v95 = vpop.permute.xlu0 %94
    %v97 = vmul.f32 %v90, %v64
    %v98 = vmul.f32 %v90, %v65
    %v99 = vmul.f32 %v95, %v66
    %v100 = vmul.f32 %v95, %v67
    %101 = vset.pattern.permute.xlu0 1
    %102 = vperm.xlu0 %101, %v44
    %v103 = vpop.permute.xlu0 %102
    %105 = vset.pattern.permute.xlu0 1
    %106 = vperm.xlu0 %105, %v45
    %v107 = vpop.permute.xlu0 %106
    %v109 = vmul.f32 %v103, %v40
    %v110 = vmul.f32 %v103, %v41
    %v111 = vmul.f32 %v107, %v42
    %v112 = vmul.f32 %v107, %v43
    %v113 = vadd.f32 %v97, %v109
    %v114 = vadd.f32 %v98, %v110
    %v115 = vadd.f32 %v99, %v111
    %v116 = vadd.f32 %v100, %v112
    %117 = vset.pattern.permute.xlu0 2
    %118 = vperm.xlu0 %117, %v44
    %v119 = vpop.permute.xlu0 %118
    %121 = vset.pattern.permute.xlu0 2
    %122 = vperm.xlu0 %121, %v45
    %v123 = vpop.permute.xlu0 %122
    %v125 = vmul.f32 %v119, %v83
    %v126 = vmul.f32 %v119, %v84
    %v127 = vmul.f32 %v123, %v85
    %v128 = vmul.f32 %v123, %v86
    %v129 = vadd.f32 %v113, %v125
    %v130 = vadd.f32 %v114, %v126
    %v131 = vadd.f32 %v115, %v127
    %v132 = vadd.f32 %v116, %v128
    %133 = vset.pattern.permute.xlu0 3
    %134 = vperm.xlu0 %133, %v44
    %v135 = vpop.permute.xlu0 %134
    %137 = vset.pattern.permute.xlu0 3
    %138 = vperm.xlu0 %137, %v45
    %v139 = vpop.permute.xlu0 %138
    %v141 = vadd.f32 %v129, %v135
    %v142 = vadd.f32 %v130, %v135
    %v143 = vadd.f32 %v131, %v139
    %v144 = vadd.f32 %v132, %v139
    %v145 = vadd.f32 %v141, %v142
    %v146 = vadd.f32 %v143, %v144
    %149 = vrot.lane.b32.xlu0 %v145, 64
    %v150 = vpop.permute.xlu0 %149
    %151 = vrot.lane.b32.xlu0 %v146, 64
    %v152 = vpop.permute.xlu0 %151
    %v155 = vadd.f32 %v145, %v150
    %v156 = vadd.f32 %v146, %v152
    %159 = vrot.lane.b32.xlu0 %v155, 96
    %v160 = vpop.permute.xlu0 %159
    %161 = vrot.lane.b32.xlu0 %v156, 96
    %v162 = vpop.permute.xlu0 %161
    %v165 = vadd.f32 %v155, %v160
    %v166 = vadd.f32 %v156, %v162
    %169 = vrot.lane.b32.xlu0 %v165, 112
    %v170 = vpop.permute.xlu0 %169
    %171 = vrot.lane.b32.xlu0 %v166, 112
    %v172 = vpop.permute.xlu0 %171
    %v175 = vadd.f32 %v165, %v170
    %v176 = vadd.f32 %v166, %v172
    %179 = vrot.lane.b32.xlu0 %v175, 1
    %v180 = vpop.permute.xlu0 %179
    %181 = vrot.lane.b32.xlu0 %v176, 1
    %v182 = vpop.permute.xlu0 %181
    %vm185 = vcmask 7168
    %v186 = vsel %vm185, 0.0, %v180
    %v187 = vsel %vm185, 0.0, %v182
    %188 = vrot.lane.b32.xlu0 %v175, 127
    %v189 = vpop.permute.xlu0 %188
    %190 = vrot.lane.b32.xlu0 %v176, 127
    %v191 = vpop.permute.xlu0 %190
    %vm194 = vcmask 121856
    %v195 = vsel %vm194, %v189, 0.0
    %v196 = vsel %vm194, %v191, 0.0
    %197 = vset.pattern.permute.xlu0 4
    %198 = vperm.xlu0 %197, %v44
    %v199 = vpop.permute.xlu0 %198
    %201 = vset.pattern.permute.xlu0 4
    %202 = vperm.xlu0 %201, %v45
    %v203 = vpop.permute.xlu0 %202
    %v205 = vmul.f32 %v199, %v186
    %v206 = vmul.f32 %v203, %v187
    %207 = vset.pattern.permute.xlu0 5
    %208 = vperm.xlu0 %207, %v44
    %v209 = vpop.permute.xlu0 %208
    %211 = vset.pattern.permute.xlu0 5
    %212 = vperm.xlu0 %211, %v45
    %v213 = vpop.permute.xlu0 %212
    %v215 = vmul.f32 %v209, %v175
    %v216 = vmul.f32 %v213, %v176
    %v217 = vadd.f32 %v205, %v215
    %v218 = vadd.f32 %v206, %v216
    %219 = vset.pattern.permute.xlu0 6
    %220 = vperm.xlu0 %219, %v44
    %v221 = vpop.permute.xlu0 %220
    %223 = vset.pattern.permute.xlu0 6
    %224 = vperm.xlu0 %223, %v45
    %v225 = vpop.permute.xlu0 %224
    %v227 = vmul.f32 %v221, %v195
    %v228 = vmul.f32 %v225, %v196
    %v229 = vadd.f32 %v217, %v227
    %v230 = vadd.f32 %v218, %v228
    %231 = vset.pattern.permute.xlu0 7
    %232 = vperm.xlu0 %231, %v44
    %v233 = vpop.permute.xlu0 %232
    %235 = vset.pattern.permute.xlu0 7
    %236 = vperm.xlu0 %235, %v45
    %v237 = vpop.permute.xlu0 %236
    %v239 = vadd.f32 %v229, %v233
    %v240 = vadd.f32 %v230, %v237
    %v241 = vsub.f32 0.0, %v239
    %v242 = vsub.f32 0.0, %v240
    %v243 = vmul.f32 %v241, 1.442695
    %v244 = vpow.pop %v243
    %v245 = vmul.f32 %v242, 1.442695
    %v246 = vpow.pop %v245
    %v247 = vadd.f32 %v244, 1.0
    %v248 = vadd.f32 %v246, 1.0
    %v249 = vrcp.pop %v247
    %v250 = vmul.f32 1.0, %v249
    %v251 = vrcp.pop %v248
    %v252 = vmul.f32 1.0, %v251
    %v253 = vmul.f32 %v239, %v250
    %v254 = vmul.f32 %v240, %v252
    %255 = vset.pattern.permute.xlu0 9
    %256 = vperm.xlu0 %255, %v44
    %v257 = vpop.permute.xlu0 %256
    %259 = vset.pattern.permute.xlu0 9
    %260 = vperm.xlu0 %259, %v45
    %v261 = vpop.permute.xlu0 %260
    %v263 = vlaneseq
    %v264 = vshrl.u32 %v263, 7
    %v265 = vsub.s32 0, %v264
    %v266 = vrot.slane %v253, %v265
    %v267 = vlaneseq
    %v268 = vshrl.u32 %v267, 7
    %v269 = vsub.s32 0, %v268
    %v270 = vrot.slane %v254, %v269
    %v271 = vmul.f32 %v257, %v266
    %v272 = vmul.f32 %v261, %v270
    %273 = vset.pattern.permute.xlu0 10
    %274 = vperm.xlu0 %273, %v44
    %v275 = vpop.permute.xlu0 %274
    %277 = vset.pattern.permute.xlu0 10
    %278 = vperm.xlu0 %277, %v45
    %v279 = vpop.permute.xlu0 %278
    %v281 = vlaneseq
    %v282 = vshrl.u32 %v281, 7
    %v283 = vsub.s32 1, %v282
    %v284 = vrot.slane %v253, %v283
    %v285 = vlaneseq
    %v286 = vshrl.u32 %v285, 7
    %v287 = vsub.s32 1, %v286
    %v288 = vrot.slane %v254, %v287
    %v289 = vmul.f32 %v275, %v284
    %v290 = vmul.f32 %v279, %v288
    %v291 = vadd.f32 %v271, %v289
    %v292 = vadd.f32 %v272, %v290
    %293 = vset.pattern.permute.xlu0 11
    %294 = vperm.xlu0 %293, %v44
    %v295 = vpop.permute.xlu0 %294
    %297 = vset.pattern.permute.xlu0 11
    %298 = vperm.xlu0 %297, %v45
    %v299 = vpop.permute.xlu0 %298
    %v301 = vlaneseq
    %v302 = vshrl.u32 %v301, 7
    %v303 = vsub.s32 2, %v302
    %v304 = vrot.slane %v253, %v303
    %v305 = vlaneseq
    %v306 = vshrl.u32 %v305, 7
    %v307 = vsub.s32 2, %v306
    %v308 = vrot.slane %v254, %v307
    %v309 = vmul.f32 %v295, %v304
    %v310 = vmul.f32 %v299, %v308
    %v311 = vadd.f32 %v291, %v309
    %v312 = vadd.f32 %v292, %v310
    %313 = vset.pattern.permute.xlu0 12
    %314 = vperm.xlu0 %313, %v44
    %v315 = vpop.permute.xlu0 %314
    %317 = vset.pattern.permute.xlu0 12
    %318 = vperm.xlu0 %317, %v45
    %v319 = vpop.permute.xlu0 %318
    %v321 = vlaneseq
    %v322 = vshrl.u32 %v321, 7
    %v323 = vsub.s32 3, %v322
    %v324 = vrot.slane %v253, %v323
    %v325 = vlaneseq
    %v326 = vshrl.u32 %v325, 7
    %v327 = vsub.s32 3, %v326
    %v328 = vrot.slane %v254, %v327
    %v329 = vmul.f32 %v315, %v324
    %v330 = vmul.f32 %v319, %v328
    %v331 = vadd.f32 %v311, %v329
    %v332 = vadd.f32 %v312, %v330
    %333 = vset.pattern.permute.xlu0 13
    %334 = vperm.xlu0 %333, %v44
    %v335 = vpop.permute.xlu0 %334
    %337 = vset.pattern.permute.xlu0 13
    %338 = vperm.xlu0 %337, %v45
    %v339 = vpop.permute.xlu0 %338
    %v341 = vlaneseq
    %v342 = vshrl.u32 %v341, 7
    %v343 = vsub.s32 4, %v342
    %v344 = vrot.slane %v253, %v343
    %v345 = vlaneseq
    %v346 = vshrl.u32 %v345, 7
    %v347 = vsub.s32 4, %v346
    %v348 = vrot.slane %v254, %v347
    %v349 = vmul.f32 %v335, %v344
    %v350 = vmul.f32 %v339, %v348
    %v351 = vadd.f32 %v331, %v349
    %v352 = vadd.f32 %v332, %v350
    %353 = vset.pattern.permute.xlu0 14
    %354 = vperm.xlu0 %353, %v44
    %v355 = vpop.permute.xlu0 %354
    %357 = vset.pattern.permute.xlu0 14
    %358 = vperm.xlu0 %357, %v45
    %v359 = vpop.permute.xlu0 %358
    %v361 = vlaneseq
    %v362 = vshrl.u32 %v361, 7
    %v363 = vsub.s32 5, %v362
    %v364 = vrot.slane %v253, %v363
    %v365 = vlaneseq
    %v366 = vshrl.u32 %v365, 7
    %v367 = vsub.s32 5, %v366
    %v368 = vrot.slane %v254, %v367
    %v369 = vmul.f32 %v355, %v364
    %v370 = vmul.f32 %v359, %v368
    %v371 = vadd.f32 %v351, %v369
    %v372 = vadd.f32 %v352, %v370
    %373 = vset.pattern.permute.xlu0 15
    %374 = vperm.xlu0 %373, %v44
    %v375 = vpop.permute.xlu0 %374
    %377 = vset.pattern.permute.xlu0 15
    %378 = vperm.xlu0 %377, %v45
    %v379 = vpop.permute.xlu0 %378
    %v381 = vlaneseq
    %v382 = vshrl.u32 %v381, 7
    %v383 = vsub.s32 6, %v382
    %v384 = vrot.slane %v253, %v383
    %v385 = vlaneseq
    %v386 = vshrl.u32 %v385, 7
    %v387 = vsub.s32 6, %v386
    %v388 = vrot.slane %v254, %v387
    %v389 = vmul.f32 %v375, %v384
    %v390 = vmul.f32 %v379, %v388
    %v391 = vadd.f32 %v371, %v389
    %v392 = vadd.f32 %v372, %v390
    %393 = vset.pattern.permute.xlu0 16
    %394 = vperm.xlu0 %393, %v44
    %v395 = vpop.permute.xlu0 %394
    %397 = vset.pattern.permute.xlu0 16
    %398 = vperm.xlu0 %397, %v45
    %v399 = vpop.permute.xlu0 %398
    %v401 = vlaneseq
    %v402 = vshrl.u32 %v401, 7
    %v403 = vsub.s32 7, %v402
    %v404 = vrot.slane %v253, %v403
    %v405 = vlaneseq
    %v406 = vshrl.u32 %v405, 7
    %v407 = vsub.s32 7, %v406
    %v408 = vrot.slane %v254, %v407
    %v409 = vmul.f32 %v395, %v404
    %v410 = vmul.f32 %v399, %v408
    %v411 = vadd.f32 %v391, %v409
    %v412 = vadd.f32 %v392, %v410
    %413 = vset.pattern.permute.xlu0 8
    %414 = vperm.xlu0 %413, %v44
    %v415 = vpop.permute.xlu0 %414
    %417 = vset.pattern.permute.xlu0 8
    %418 = vperm.xlu0 %417, %v45
    %v419 = vpop.permute.xlu0 %418
    %v421 = vadd.f32 %v411, %v415
    %v422 = vadd.f32 %v412, %v419
    %425 = vrot.lane.b32.xlu0 %v421, 16
    %v426 = vpop.permute.xlu0 %425
    %427 = vrot.lane.b32.xlu0 %v422, 16
    %v428 = vpop.permute.xlu0 %427
    %vm431 = vcmask 130048
    %v432 = vsel %vm431, %v421, %v426
    %v433 = vsel %vm431, %v422, %v428
    %436 = vrot.lane.b32.xlu0 %v432, 32
    %v437 = vpop.permute.xlu0 %436
    %438 = vrot.lane.b32.xlu0 %v433, 32
    %v439 = vpop.permute.xlu0 %438
    %vm442 = vcmask 261120
    %v443 = vsel %vm442, %v432, %v437
    %v444 = vsel %vm442, %v433, %v439
    %447 = vrot.lane.b32.xlu0 %v443, 64
    %v448 = vpop.permute.xlu0 %447
    %449 = vrot.lane.b32.xlu0 %v444, 64
    %v450 = vpop.permute.xlu0 %449
    %vm453 = vcmask 523264
    %v454 = vsel %vm453, %v443, %v448
    %v455 = vsel %vm453, %v444, %v450
    %v456 = vadd.f32 %v454, %v141
    %v457 = vadd.f32 %v454, %v142
    %v458 = vadd.f32 %v455, %v143
    %v459 = vadd.f32 %v455, %v144
    %v460 = vadd.f32 %v456, %v40
    %v461 = vadd.f32 %v457, %v41
    %v462 = vadd.f32 %v458, %v42
    %v463 = vadd.f32 %v459, %v43
    %v464 = vmax.f32 %v460, 0.0
    %v465 = vmax.f32 %v461, 0.0
    %v466 = vmax.f32 %v462, 0.0
    %v467 = vmax.f32 %v463, 0.0
    %468 = vst [vmem:[#allocation7] sm:$0xff] %v464
    %469 = vst [vmem:[#allocation7 + $0x8] sm:$0xff] %v465
    %470 = vst [vmem:[#allocation7 + $0x10] sm:$0xff] %v466
    %471 = vst [vmem:[#allocation7 + $0x18] sm:$0xff] %v467
    // Predicated region
    $region18: #{tpu_custom_call.1} parent=1 // pred_check
      _
    $region19: #{tpu_custom_call.1} parent=1 // pred_check_branch
      %473 = sbr.rel (0) target = $region21
    $region20: #{tpu_custom_call.1} parent=1 // pred_region
      %s475 = ssub.s32 512, 512
      %476 = vsyncadd [#allocation4], %s475
      %s477 = sshll.u32 [#allocation7], 4
      %s478 = int_to_ptr.vmem [resolvable:$true] %s477
      %483 = dma.vmem_to_hbm [thread:$0]  %s478, 512, %s2, [#allocation4], 256, 256, 16
    $region21: #{tpu_custom_call.1} parent=1 // pred_fallthru
      _
    // Predicated region
    $region22: #{tpu_custom_call.1} parent=1 // pred_check
      _
    $region23: #{tpu_custom_call.1} parent=1 // pred_check_branch
      %485 = sbr.rel (0) target = $region25
    $region24: #{tpu_custom_call.1} parent=1 // pred_region
      %486 = dma.done [#allocation4], 512
    $region25: #{tpu_custom_call.1} parent=1 // pred_fallthru
      _
    %487 = vsyncpa [#allocation3], 1
    %488 = vsyncpa [#allocation6], 1
    %489 = vsyncpa [#allocation4], 1

</llo_original>
